<compile_context>
chip_gen: v7x
topology: tpu7x:2x2x1
jax: 0.10.0
libtpu: 0.0.40
codegen_flags: <defaults>
</compile_context>

<pallas_src>
import functools

import jax
import jax.numpy as jnp
from jax import lax
from jax.experimental import pallas as pl
from jax.experimental.pallas import tpu as pltpu


def mlp_kernel(x_ref, w1_ref, b1_ref, w2_ref, b2_ref, w3_ref, b3_ref,
               w4_ref, b4_ref, o_ref, *, n_chunks, chunk):
    # First layer contracts dim 1 of both operands: (32,13) x (chunk,13) -> (32,chunk),
    # so the batch lands on the lane dim without any wrapper-side transpose of x.
    dn_first = (((1,), (1,)), ((), ()))

    def act(h, b_ref):
        # Epilogue precision follows the bias dtype (bf16 on v6e/v7x, f32 on v5e).
        h = jnp.maximum(h.astype(b_ref.dtype) + b_ref[...], 0.0)
        return h.astype(jnp.bfloat16)  # next MXU operand

    # Statically unrolled sub-chunk loop: one grid step's bookkeeping per TB columns,
    # but only a (.., chunk)-wide f32/bf16 live set at any time (no spills).
    for c in range(n_chunks):
        lo = c * chunk
        xc = x_ref[lo:lo + chunk, :].astype(jnp.bfloat16)                   # (chunk, 13)
        h1 = lax.dot_general(w1_ref[...], xc, dn_first,
                             preferred_element_type=jnp.float32)            # (32, chunk)
        h1 = act(h1, b1_ref)
        h2 = jnp.dot(w2_ref[...], h1, preferred_element_type=jnp.float32)   # (64, chunk)
        h2 = act(h2, b2_ref)
        h3 = jnp.dot(w3_ref[...], h2, preferred_element_type=jnp.float32)   # (32, chunk)
        h3 = jnp.maximum(h3.astype(b3_ref.dtype) + b3_ref[...], 0.0)
        # fc4: (1,32) x (32,chunk) as VPU mul + sublane (XLU) reduce -- an MXU push
        # for a single output row is not worth the drain.
        h4 = jnp.sum(h3.astype(jnp.float32) * w4_ref[...], axis=0,
                     keepdims=True)                                          # (1, chunk)
        o_ref[:, lo:lo + chunk] = (h4 + b4_ref[...]).astype(o_ref.dtype)


def _bf16_epilogue_supported():
    # v6e/v7x VPUs have bf16 ALUs; v5e (and earlier) do not -> keep f32 epilogue there.
    try:
        kind = jax.devices()[0].device_kind.lower()
    except Exception:
        return False
    return ("v6" in kind) or ("v7" in kind)


def reference_forward(x, p):
    h = jnp.maximum(x @ p["w1"].T + p["b1"], 0.0)
    h = jnp.maximum(h @ p["w2"].T + p["b2"], 0.0)
    h = jnp.maximum(h @ p["w3"].T + p["b3"], 0.0)
    return h @ p["w4"].T + p["b4"]


def my_model_forward(x, params, *, min_pallas_batch=1024):
    """x: (B, in_features) f32.  params: PyTorch-layout Linear params
    (w{i}: (out, in) f32, b{i}: (out,) f32).  Returns (B, 1) f32."""
    B, F = x.shape

    if B < min_pallas_batch:
        # Overhead-dominated regime: fused XLA path is as fast or faster.
        return reference_forward(x, params)

    LANE = 128
    B_pad = pl.cdiv(B, LANE) * LANE
    # >= 2 grid steps whenever possible (v7x: 2 TCs; extra step ~free on v5e/v6e);
    # pick the largest TB <= 2048 that divides B_pad (zero pad waste beyond 128).
    tb_cap = B_pad // 2 if B_pad >= 2 * LANE else B_pad
    TB = LANE
    for cand in (2048, 1024, 512, 256, 128):
        if cand <= tb_cap and B_pad % cand == 0:
            TB = cand
            break
    grid = (B_pad // TB,)
    CHUNK = min(256, TB)
    n_chunks = TB // CHUNK

    if B_pad != B:
        x = jnp.pad(x, ((0, B_pad - B), (0, 0)))           # f32; no transpose/cast pass

    ep_dtype = jnp.bfloat16 if _bf16_epilogue_supported() else jnp.float32

    w1 = params["w1"].astype(jnp.bfloat16)                 # (32, 13)
    w2 = params["w2"].astype(jnp.bfloat16)                 # (64, 32)
    w3 = params["w3"].astype(jnp.bfloat16)                 # (32, 64)
    w4 = params["w4"].T.astype(jnp.float32)                # (32, 1)   VPU path stays f32
    b1 = params["b1"].reshape(-1, 1).astype(ep_dtype)      # (32, 1)
    b2 = params["b2"].reshape(-1, 1).astype(ep_dtype)      # (64, 1)
    b3 = params["b3"].reshape(-1, 1).astype(ep_dtype)      # (32, 1)
    b4 = params["b4"].reshape(1, 1).astype(jnp.float32)    # (1, 1)

    # Constant block index -> weights/biases stay VMEM-resident across the grid.
    resident = lambda a: pl.BlockSpec(a.shape, lambda i: (0,) * a.ndim)

    out_t = pl.pallas_call(
        functools.partial(mlp_kernel, n_chunks=n_chunks, chunk=CHUNK),
        out_shape=jax.ShapeDtypeStruct((1, B_pad), jnp.float32),
        grid=grid,
        in_specs=[pl.BlockSpec((TB, F), lambda i: (i, 0)),   # natural (B,13) layout
                  resident(w1), resident(b1),
                  resident(w2), resident(b2),
                  resident(w3), resident(b3),
                  resident(w4), resident(b4)],
        out_specs=pl.BlockSpec((1, TB), lambda i: (0, i)),    # lane-dense output
        compiler_params=pltpu.CompilerParams(
            dimension_semantics=("parallel",)),               # v7x: shard batch tiles
    )(x, w1, b1, w2, b2, w3, b3, w4, b4)

    return out_t[:, :B].T                                     # (B, 1)


def init_params(key, in_features):
    """nn.Linear-style init: U(-1/sqrt(fan_in), 1/sqrt(fan_in)), PyTorch layout."""
    dims = [(in_features, 32), (32, 64), (64, 32), (32, 1)]
    params = {}
    for i, (fi, fo) in enumerate(dims, start=1):
        key, kw, kb = jax.random.split(key, 3)
        bound = 1.0 / jnp.sqrt(jnp.float32(fi))
        params[f"w{i}"] = jax.random.uniform(kw, (fo, fi), jnp.float32, -bound, bound)
        params[f"b{i}"] = jax.random.uniform(kb, (fo,), jnp.float32, -bound, bound)
    return params


if __name__ == "__main__":
    key = jax.random.PRNGKey(0)
    key, kx = jax.random.split(key)
    in_features = 13          # Boston Housing feature count
    params = init_params(key, in_features)

    # Force the Pallas path even at small batch for this test.
    fwd = jax.jit(functools.partial(my_model_forward, min_pallas_batch=0))

    # batch=8: small-shape path (TB=128, grid=1).  batch=1024: exercises the
    # adaptive tiling (TB=512, grid=2) and the in-kernel 256-lane sub-chunk loop.
    for batch in (8, 1024):
        kx, sub = jax.random.split(kx)
        x = jax.random.normal(sub, (batch, in_features), jnp.float32)
        out = jax.block_until_ready(fwd(x, params))
        ref = reference_forward(x, params)
        assert out.shape == (batch, 1), out.shape
        # bf16 MXU operands (+ bf16 epilogue on v6e/v7x) -> loosened tolerance vs f32 ref.
        assert jnp.allclose(out, ref, atol=5e-2, rtol=5e-2), (batch, out, ref)

    print("KERNEL_OK")
</pallas_src>

<mosaic_0001>
module attributes {stable_mosaic.version = 11 : i64} {
  func.func @mlp_kernel(%arg0: i32, %arg1: memref<128x13xf32, #tpu.memory_space<vmem>>, %arg2: memref<32x13xbf16, #tpu.memory_space<vmem>>, %arg3: memref<32x1xf32, #tpu.memory_space<vmem>>, %arg4: memref<64x32xbf16, #tpu.memory_space<vmem>>, %arg5: memref<64x1xf32, #tpu.memory_space<vmem>>, %arg6: memref<32x64xbf16, #tpu.memory_space<vmem>>, %arg7: memref<32x1xf32, #tpu.memory_space<vmem>>, %arg8: memref<32x1xf32, #tpu.memory_space<vmem>>, %arg9: memref<1x1xf32, #tpu.memory_space<vmem>>, %arg10: memref<1x128xf32, #tpu.memory_space<vmem>>) attributes {dimension_semantics = [#tpu.dimension_semantics<parallel>], iteration_bounds = array<i64: 1>, scalar_prefetch = 0 : i64, scratch_operands = 0 : i64, tpu.core_type = #tpu.core_type<tc>, window_params = [{transform_indices = @transform_0, window_bounds = array<i64: 128, 13>}, {pipeline_mode = #tpu.pipeline_mode<synchronous>, transform_indices = @transform_1, window_bounds = array<i64: 32, 13>}, {pipeline_mode = #tpu.pipeline_mode<synchronous>, transform_indices = @transform_2, window_bounds = array<i64: 32, 1>}, {pipeline_mode = #tpu.pipeline_mode<synchronous>, transform_indices = @transform_3, window_bounds = array<i64: 64, 32>}, {pipeline_mode = #tpu.pipeline_mode<synchronous>, transform_indices = @transform_4, window_bounds = array<i64: 64, 1>}, {pipeline_mode = #tpu.pipeline_mode<synchronous>, transform_indices = @transform_5, window_bounds = array<i64: 32, 64>}, {pipeline_mode = #tpu.pipeline_mode<synchronous>, transform_indices = @transform_6, window_bounds = array<i64: 32, 1>}, {pipeline_mode = #tpu.pipeline_mode<synchronous>, transform_indices = @transform_7, window_bounds = array<i64: 32, 1>}, {pipeline_mode = #tpu.pipeline_mode<synchronous>, transform_indices = @transform_8, window_bounds = array<i64: 1, 1>}, {transform_indices = @transform_9, window_bounds = array<i64: 1, 128>}]} {
    %c0 = arith.constant 0 : index
    %c0_0 = arith.constant 0 : index
    %0 = vector.load %arg1[%c0, %c0_0] : memref<128x13xf32, #tpu.memory_space<vmem>>, vector<128x13xf32>
    %1 = arith.truncf %0 : vector<128x13xf32> to vector<128x13xbf16>
    %c0_1 = arith.constant 0 : index
    %c0_2 = arith.constant 0 : index
    %2 = vector.load %arg2[%c0_1, %c0_2] : memref<32x13xbf16, #tpu.memory_space<vmem>>, vector<32x13xbf16>
    %cst = arith.constant dense<0.000000e+00> : vector<32x128xf32>
    %3 = tpu.matmul %2, %1, %cst {dimension_numbers = #tpu.dot_dimension_numbers<[1], [1], [0], [0], [0, 0, 1, 0], [], []>} : vector<32x13xbf16>, vector<128x13xbf16>, vector<32x128xf32> -> vector<32x128xf32>
    %c0_3 = arith.constant 0 : index
    %c0_4 = arith.constant 0 : index
    %4 = vector.load %arg3[%c0_3, %c0_4] : memref<32x1xf32, #tpu.memory_space<vmem>>, vector<32x1xf32>
    %5 = vector.broadcast %4 : vector<32x1xf32> to vector<32x128xf32>
    %6 = arith.addf %3, %5 : vector<32x128xf32>
    %cst_5 = arith.constant 0.000000e+00 : f32
    %7 = vector.broadcast %cst_5 : f32 to vector<32x128xf32>
    %8 = arith.maximumf %6, %7 : vector<32x128xf32>
    %9 = arith.truncf %8 : vector<32x128xf32> to vector<32x128xbf16>
    %c0_6 = arith.constant 0 : index
    %c0_7 = arith.constant 0 : index
    %10 = vector.load %arg4[%c0_6, %c0_7] : memref<64x32xbf16, #tpu.memory_space<vmem>>, vector<64x32xbf16>
    %cst_8 = arith.constant dense<0.000000e+00> : vector<64x128xf32>
    %11 = tpu.matmul %10, %9, %cst_8 {dimension_numbers = #tpu.dot_dimension_numbers<[1], [0], [0], [1], [0, 0, 1, 1], [], []>} : vector<64x32xbf16>, vector<32x128xbf16>, vector<64x128xf32> -> vector<64x128xf32>
    %c0_9 = arith.constant 0 : index
    %c0_10 = arith.constant 0 : index
    %12 = vector.load %arg5[%c0_9, %c0_10] : memref<64x1xf32, #tpu.memory_space<vmem>>, vector<64x1xf32>
    %13 = vector.broadcast %12 : vector<64x1xf32> to vector<64x128xf32>
    %14 = arith.addf %11, %13 : vector<64x128xf32>
    %cst_11 = arith.constant 0.000000e+00 : f32
    %15 = vector.broadcast %cst_11 : f32 to vector<64x128xf32>
    %16 = arith.maximumf %14, %15 : vector<64x128xf32>
    %17 = arith.truncf %16 : vector<64x128xf32> to vector<64x128xbf16>
    %c0_12 = arith.constant 0 : index
    %c0_13 = arith.constant 0 : index
    %18 = vector.load %arg6[%c0_12, %c0_13] : memref<32x64xbf16, #tpu.memory_space<vmem>>, vector<32x64xbf16>
    %cst_14 = arith.constant dense<0.000000e+00> : vector<32x128xf32>
    %19 = tpu.matmul %18, %17, %cst_14 {dimension_numbers = #tpu.dot_dimension_numbers<[1], [0], [0], [1], [0, 0, 1, 1], [], []>} : vector<32x64xbf16>, vector<64x128xbf16>, vector<32x128xf32> -> vector<32x128xf32>
    %c0_15 = arith.constant 0 : index
    %c0_16 = arith.constant 0 : index
    %20 = vector.load %arg7[%c0_15, %c0_16] : memref<32x1xf32, #tpu.memory_space<vmem>>, vector<32x1xf32>
    %21 = vector.broadcast %20 : vector<32x1xf32> to vector<32x128xf32>
    %22 = arith.addf %19, %21 : vector<32x128xf32>
    %cst_17 = arith.constant 0.000000e+00 : f32
    %23 = vector.broadcast %cst_17 : f32 to vector<32x128xf32>
    %24 = arith.maximumf %22, %23 : vector<32x128xf32>
    %c0_18 = arith.constant 0 : index
    %c0_19 = arith.constant 0 : index
    %25 = vector.load %arg8[%c0_18, %c0_19] : memref<32x1xf32, #tpu.memory_space<vmem>>, vector<32x1xf32>
    %26 = vector.broadcast %25 : vector<32x1xf32> to vector<32x128xf32>
    %27 = arith.mulf %24, %26 : vector<32x128xf32>
    %cst_20 = arith.constant dense<0.000000e+00> : vector<128xf32>
    %28 = vector.multi_reduction <add>, %27, %cst_20 [0] : vector<32x128xf32> to vector<128xf32>
    %29 = vector.shape_cast %28 : vector<128xf32> to vector<1x128xf32>
    %c0_21 = arith.constant 0 : index
    %c0_22 = arith.constant 0 : index
    %30 = vector.load %arg9[%c0_21, %c0_22] : memref<1x1xf32, #tpu.memory_space<vmem>>, vector<1x1xf32>
    %31 = vector.broadcast %30 : vector<1x1xf32> to vector<1x128xf32>
    %32 = arith.addf %29, %31 : vector<1x128xf32>
    %c0_23 = arith.constant 0 : index
    %c0_24 = arith.constant 0 : index
    %33 = vector.load %arg10[%c0_23, %c0_24] : memref<1x128xf32, #tpu.memory_space<vmem>>, vector<1x128xf32>
    tpu.vector_store %arg10[%c0_23, %c0_24], %32 {strides = array<i32>} : memref<1x128xf32, #tpu.memory_space<vmem>>, vector<1x128xf32>,
    return
  }
  func.func @transform_0(%arg0: i32) -> (i32, i32) {
    %c0_i32 = arith.constant 0 : i32
    %c0_i32_0 = arith.constant 0 : i32
    return %arg0, %c0_i32 : i32, i32
  }
  func.func @transform_1(%arg0: i32) -> (i32, i32) {
    %c0_i32 = arith.constant 0 : i32
    %c0_i32_0 = arith.constant 0 : i32
    %c0_i32_1 = arith.constant 0 : i32
    return %c0_i32, %c0_i32_0 : i32, i32
  }
  func.func @transform_2(%arg0: i32) -> (i32, i32) {
    %c0_i32 = arith.constant 0 : i32
    %c0_i32_0 = arith.constant 0 : i32
    %c0_i32_1 = arith.constant 0 : i32
    return %c0_i32, %c0_i32_0 : i32, i32
  }
  func.func @transform_3(%arg0: i32) -> (i32, i32) {
    %c0_i32 = arith.constant 0 : i32
    %c0_i32_0 = arith.constant 0 : i32
    %c0_i32_1 = arith.constant 0 : i32
    return %c0_i32, %c0_i32_0 : i32, i32
  }
  func.func @transform_4(%arg0: i32) -> (i32, i32) {
    %c0_i32 = arith.constant 0 : i32
    %c0_i32_0 = arith.constant 0 : i32
    %c0_i32_1 = arith.constant 0 : i32
    return %c0_i32, %c0_i32_0 : i32, i32
  }
  func.func @transform_5(%arg0: i32) -> (i32, i32) {
    %c0_i32 = arith.constant 0 : i32
    %c0_i32_0 = arith.constant 0 : i32
    %c0_i32_1 = arith.constant 0 : i32
    return %c0_i32, %c0_i32_0 : i32, i32
  }
  func.func @transform_6(%arg0: i32) -> (i32, i32) {
    %c0_i32 = arith.constant 0 : i32
    %c0_i32_0 = arith.constant 0 : i32
    %c0_i32_1 = arith.constant 0 : i32
    return %c0_i32, %c0_i32_0 : i32, i32
  }
  func.func @transform_7(%arg0: i32) -> (i32, i32) {
    %c0_i32 = arith.constant 0 : i32
    %c0_i32_0 = arith.constant 0 : i32
    %c0_i32_1 = arith.constant 0 : i32
    return %c0_i32, %c0_i32_0 : i32, i32
  }
  func.func @transform_8(%arg0: i32) -> (i32, i32) {
    %c0_i32 = arith.constant 0 : i32
    %c0_i32_0 = arith.constant 0 : i32
    %c0_i32_1 = arith.constant 0 : i32
    return %c0_i32, %c0_i32_0 : i32, i32
  }
  func.func @transform_9(%arg0: i32) -> (i32, i32) {
    %c0_i32 = arith.constant 0 : i32
    %c0_i32_0 = arith.constant 0 : i32
    return %c0_i32, %arg0 : i32, i32
  }
}

</mosaic_0001>

<llo_original>
// kernel: my_model_forward.1
$region0: #{my_model_forward.1}
  #allocation0 [shape = 'u32[]', space=smem, size = 0x4, offset = 0x4, fixed_abs, tag = 'smem constant byte address 0x4 - core index']
  #allocation1 [shape = 'u32[144,128]{1,0:T(1,128)}', space=vmem, size = 0x12000, scoped, tag = 'internal scratch']
  #allocation2 [shape = 'f32[1,1]{1,0:T(1,128)S(1)}', space=vmem, size = 0x200, scoped, tag = 'scoped memory for my_model_forward.1']
  %s0 = inlined_call_operand.vmem [shape: f32[128,13], index: 0, kind: input, shape index: {}]
  %s1 = inlined_call_operand.vmem [shape: bf16[32,13], index: 1, kind: input, shape index: {}]
  %s2 = inlined_call_operand.vmem [shape: f32[32,1], index: 2, kind: input, shape index: {}]
  %s3 = inlined_call_operand.vmem [shape: bf16[64,32], index: 3, kind: input, shape index: {}]
  %s4 = inlined_call_operand.vmem [shape: f32[64,1], index: 4, kind: input, shape index: {}]
  %s5 = inlined_call_operand.vmem [shape: bf16[32,64], index: 5, kind: input, shape index: {}]
  %s6 = inlined_call_operand.vmem [shape: f32[32,1], index: 6, kind: input, shape index: {}]
  %s7 = inlined_call_operand.vmem [shape: f32[32,1], index: 7, kind: input, shape index: {}]
  %s8 = inlined_call_operand.<no memory space> [shape: f32[1,1], index: 8, kind: input, shape index: {}]
  %s9 = inlined_call_operand.vmem [shape: f32[1,128], index: 9, kind: output, shape index: {}]
  %s10 = sld [smem:[#allocation0]]
  $region46: #{my_model_forward.1} parent=0
    _
  %s12 = ssub.s32 1, %s10
  %s13 = scalar_select 0, %s12, %s10
  %v14 = vstv %s8
  %15 = vst [vmem:[#allocation2] sm:$0x1] %v14
  // Predicated region
  $region2: #{my_model_forward.1} parent=0 // pred_check
    _
  $region3: #{my_model_forward.1} parent=0 // pred_check_branch
    %17 = sbr.rel (0) target = $region5
  $region4: #{my_model_forward.1} parent=0 // pred_region
    _
  $region5: #{my_model_forward.1} parent=0 // pred_fallthru
    _
  // Predicated region
  $region6: #{my_model_forward.1} parent=0 // pred_check
    _
  $region7: #{my_model_forward.1} parent=0 // pred_check_branch
    %19 = sbr.rel (0) target = $region9
  $region8: #{my_model_forward.1} parent=0 // pred_region
    _
  $region9: #{my_model_forward.1} parent=0 // pred_fallthru
    _
  // Predicated region
  $region10: #{my_model_forward.1} parent=0 // pred_check
    _
  $region11: #{my_model_forward.1} parent=0 // pred_check_branch
    %21 = sbr.rel (0) target = $region13
  $region12: #{my_model_forward.1} parent=0 // pred_region
    _
  $region13: #{my_model_forward.1} parent=0 // pred_fallthru
    _
  // Predicated region
  $region14: #{my_model_forward.1} parent=0 // pred_check
    _
  $region15: #{my_model_forward.1} parent=0 // pred_check_branch
    %23 = sbr.rel (0) target = $region17
  $region16: #{my_model_forward.1} parent=0 // pred_region
    _
  $region17: #{my_model_forward.1} parent=0 // pred_fallthru
    _
  // Predicated region
  $region18: #{my_model_forward.1} parent=0 // pred_check
    _
  $region19: #{my_model_forward.1} parent=0 // pred_check_branch
    %25 = sbr.rel (0) target = $region21
  $region20: #{my_model_forward.1} parent=0 // pred_region
    _
  $region21: #{my_model_forward.1} parent=0 // pred_fallthru
    _
  // Predicated region
  $region22: #{my_model_forward.1} parent=0 // pred_check
    _
  $region23: #{my_model_forward.1} parent=0 // pred_check_branch
    %27 = sbr.rel (0) target = $region25
  $region24: #{my_model_forward.1} parent=0 // pred_region
    _
  $region25: #{my_model_forward.1} parent=0 // pred_fallthru
    _
  // Predicated region
  $region26: #{my_model_forward.1} parent=0 // pred_check
    _
  $region27: #{my_model_forward.1} parent=0 // pred_check_branch
    %29 = sbr.rel (0) target = $region29
  $region28: #{my_model_forward.1} parent=0 // pred_region
    _
  $region29: #{my_model_forward.1} parent=0 // pred_fallthru
    _
  // Predicated region
  $region30: #{my_model_forward.1} parent=0 // pred_check
    _
  $region31: #{my_model_forward.1} parent=0 // pred_check_branch
    %31 = sbr.rel (0) target = $region33
  $region32: #{my_model_forward.1} parent=0 // pred_region
    _
  $region33: #{my_model_forward.1} parent=0 // pred_fallthru
    _
  // Predicated region
  $region34: #{my_model_forward.1} parent=0 // pred_check
    _
  $region35: #{my_model_forward.1} parent=0 // pred_check_branch
    %33 = sbr.rel (0) target = $region37
  $region36: #{my_model_forward.1} parent=0 // pred_region
    _
  $region37: #{my_model_forward.1} parent=0 // pred_fallthru
    _
  %v35 = vld [vmem:[%s0] sm:$0xff]
  %v36 = vld [vmem:[%s0 + $0x8] sm:$0xff]
  %v37 = vld [vmem:[%s0 + $0x10] sm:$0xff]
  %v38 = vld [vmem:[%s0 + $0x18] sm:$0xff]
  %v39 = vld [vmem:[%s0 + $0x20] sm:$0xff]
  %v40 = vld [vmem:[%s0 + $0x28] sm:$0xff]
  %v41 = vld [vmem:[%s0 + $0x30] sm:$0xff]
  %v42 = vld [vmem:[%s0 + $0x38] sm:$0xff]
  %v43 = vld [vmem:[%s0 + $0x40] sm:$0xff]
  %v44 = vld [vmem:[%s0 + $0x48] sm:$0xff]
  %v45 = vld [vmem:[%s0 + $0x50] sm:$0xff]
  %v46 = vld [vmem:[%s0 + $0x58] sm:$0xff]
  %v47 = vld [vmem:[%s0 + $0x60] sm:$0xff]
  %v48 = vld [vmem:[%s0 + $0x68] sm:$0xff]
  %v49 = vld [vmem:[%s0 + $0x70] sm:$0xff]
  %v50 = vld [vmem:[%s0 + $0x78] sm:$0xff]
  %v51 = vpack.c.bf16 %v36, %v35
  %v52 = vpack.c.bf16 %v38, %v37
  %v53 = vpack.c.bf16 %v40, %v39
  %v54 = vpack.c.bf16 %v42, %v41
  %v55 = vpack.c.bf16 %v44, %v43
  %v56 = vpack.c.bf16 %v46, %v45
  %v57 = vpack.c.bf16 %v48, %v47
  %v58 = vpack.c.bf16 %v50, %v49
  %v59 = vld [vmem:[%s1] sm:$0xf]
  %v60 = vld [vmem:[%s1 + $0x4] sm:$0xf]
  %v61 = vld [vmem:[%s1 + $0x8] sm:$0xf]
  %v62 = vld [vmem:[%s1 + $0xc] sm:$0xf]
  %v63 = vld [vmem:[%s2] sm:$0xff]
  %v64 = vld [vmem:[%s2 + $0x8] sm:$0xff]
  %v65 = vld [vmem:[%s2 + $0x10] sm:$0xff]
  %v66 = vld [vmem:[%s2 + $0x18] sm:$0xff]
  %68 = vset.pattern.permute.xlu0 0
  %69 = vperm.xlu0 %68, %v63
  %v70 = vpop.permute.xlu0 %69
  %73 = vset.pattern.permute.xlu0 0
  %74 = vperm.xlu0 %73, %v64
  %v75 = vpop.permute.xlu0 %74
  %78 = vset.pattern.permute.xlu0 0
  %79 = vperm.xlu0 %78, %v65
  %v80 = vpop.permute.xlu0 %79
  %83 = vset.pattern.permute.xlu0 0
  %84 = vperm.xlu0 %83, %v66
  %v85 = vpop.permute.xlu0 %84
  %v91 = vunpack.c.l.b16 %v59
  %v92 = vunpack.c.l.b16 %v60
  %v93 = vunpack.c.l.b16 %v61
  %v94 = vunpack.c.l.b16 %v62
  %v95 = vpack.c.b16 %v92, %v91
  %v96 = vpack.c.b16 %v94, %v93
  %vm97 = vcmask 105472
  %v99 = vsel %vm97, %v95, 0
  %v102 = vsel %vm97, %v96, 0
  %v105 = vsel %vm97, %v51, 0
  %v108 = vsel %vm97, %v52, 0
  %v111 = vsel %vm97, %v53, 0
  %v114 = vsel %vm97, %v54, 0
  %v117 = vsel %vm97, %v55, 0
  %v120 = vsel %vm97, %v56, 0
  %v123 = vsel %vm97, %v57, 0
  %v126 = vsel %vm97, %v58, 0
  %128 = vmatprep.subr.bf16.mxu0 0
  %129 = vmatpush1.bf16.xpose.msra.mxu0 %v105
  %130 = vmatprep.subr.bf16.mxu0 0
  %131 = vmatpush1.bf16.xpose.msra.mxu0 %v108
  %132 = vmatprep.subr.bf16.mxu0 0
  %133 = vmatpush1.bf16.xpose.msra.mxu0 %v111
  %134 = vmatprep.subr.bf16.mxu0 0
  %135 = vmatpush1.bf16.xpose.msra.mxu0 %v114
  %136 = vmatprep.subr.bf16.mxu0 0
  %137 = vmatpush1.bf16.xpose.msra.mxu0 %v117
  %138 = vmatprep.subr.bf16.mxu0 0
  %139 = vmatpush1.bf16.xpose.msra.mxu0 %v120
  %140 = vmatprep.subr.bf16.mxu0 0
  %141 = vmatpush1.bf16.xpose.msra.mxu0 %v123
  %142 = vmatprep.subr.bf16.mxu0 0
  %143 = vmatpush1.bf16.xpose.msra.mxu0 %v126
  %144 = vmatprep.subr.bf16.mxu0 0
  %145 = vmatpush1.bf16.xpose.msra.mxu0 0
  %146 = vmatprep.subr.bf16.mxu0 0
  %147 = vmatpush1.bf16.xpose.msra.mxu0 0
  %148 = vmatprep.subr.bf16.mxu0 0
  %149 = vmatpush1.bf16.xpose.msra.mxu0 0
  %150 = vmatprep.subr.bf16.mxu0 0
  %151 = vmatpush1.bf16.xpose.msra.mxu0 0
  %152 = vmatprep.subr.bf16.mxu0 0
  %153 = vmatpush1.bf16.xpose.msra.mxu0 0
  %154 = vmatprep.subr.bf16.mxu0 0
  %155 = vmatpush1.bf16.xpose.msra.mxu0 0
  %156 = vmatprep.subr.bf16.mxu0 0
  %157 = vmatpush1.bf16.xpose.msra.mxu0 0
  %158 = vmatprep.subr.bf16.mxu0 0
  %159 = vmatpush1.bf16.xpose.msra.mxu0 0
  %160 = vmatprep.mubr.bf16.mxu0 0
  %161 = vmatmul.mubr.bf16.gmra.mrb[0].mxu0 %v99
  %v162 = vpop.f32.mrb[0].mxu0
  %v163 = vadd.f32 %v70, %v162
  %v164 = vpop.f32.mrb[0].mxu0
  %v165 = vpop.f32.mrb[0].mxu0
  %v166 = vadd.f32 %v75, %v165
  %v167 = vpop.f32.mrb[0].mxu0
  %168 = vmatprep.mubr.bf16.mxu0 0
  %169 = vmatmul.mubr.bf16.gmra.mrb[0].mxu0 %v102
  %v170 = vpop.f32.mrb[0].mxu0
  %v171 = vadd.f32 %v80, %v170
  %v172 = vpop.f32.mrb[0].mxu0
  %v173 = vpop.f32.mrb[0].mxu0
  %v174 = vadd.f32 %v85, %v173
  %v175 = vpop.f32.mrb[0].mxu0
  %176 = vdwg.mxu0
  %v177 = vmax.f32 %v163, 0.0
  %v178 = vmax.f32 %v166, 0.0
  %v179 = vmax.f32 %v171, 0.0
  %v180 = vmax.f32 %v174, 0.0
  %v181 = vpack.c.bf16 %v178, %v177
  %v182 = vpack.c.bf16 %v180, %v179
  %v183 = vld [vmem:[%s3] sm:$0xf]
  %v184 = vld [vmem:[%s3 + $0x4] sm:$0xf]
  %v185 = vld [vmem:[%s3 + $0x8] sm:$0xf]
  %v186 = vld [vmem:[%s3 + $0xc] sm:$0xf]
  %v187 = vld [vmem:[%s3 + $0x10] sm:$0xf]
  %v188 = vld [vmem:[%s3 + $0x14] sm:$0xf]
  %v189 = vld [vmem:[%s3 + $0x18] sm:$0xf]
  %v190 = vld [vmem:[%s3 + $0x1c] sm:$0xf]
  %v191 = vld [vmem:[%s4] sm:$0xff]
  %v192 = vld [vmem:[%s4 + $0x8] sm:$0xff]
  %v193 = vld [vmem:[%s4 + $0x10] sm:$0xff]
  %v194 = vld [vmem:[%s4 + $0x18] sm:$0xff]
  %v195 = vld [vmem:[%s4 + $0x20] sm:$0xff]
  %v196 = vld [vmem:[%s4 + $0x28] sm:$0xff]
  %v197 = vld [vmem:[%s4 + $0x30] sm:$0xff]
  %v198 = vld [vmem:[%s4 + $0x38] sm:$0xff]
  %200 = vset.pattern.permute.xlu0 0
  %201 = vperm.xlu0 %200, %v191
  %v202 = vpop.permute.xlu0 %201
  %205 = vset.pattern.permute.xlu0 0
  %206 = vperm.xlu0 %205, %v192
  %v207 = vpop.permute.xlu0 %206
  %210 = vset.pattern.permute.xlu0 0
  %211 = vperm.xlu0 %210, %v193
  %v212 = vpop.permute.xlu0 %211
  %215 = vset.pattern.permute.xlu0 0
  %216 = vperm.xlu0 %215, %v194
  %v217 = vpop.permute.xlu0 %216
  %220 = vset.pattern.permute.xlu0 0
  %221 = vperm.xlu0 %220, %v195
  %v222 = vpop.permute.xlu0 %221
  %225 = vset.pattern.permute.xlu0 0
  %226 = vperm.xlu0 %225, %v196
  %v227 = vpop.permute.xlu0 %226
  %230 = vset.pattern.permute.xlu0 0
  %231 = vperm.xlu0 %230, %v197
  %v232 = vpop.permute.xlu0 %231
  %235 = vset.pattern.permute.xlu0 0
  %236 = vperm.xlu0 %235, %v198
  %v237 = vpop.permute.xlu0 %236
  %v247 = vunpack.c.l.b16 %v183
  %v248 = vunpack.c.l.b16 %v184
  %v249 = vunpack.c.l.b16 %v185
  %v250 = vunpack.c.l.b16 %v186
  %v251 = vunpack.c.l.b16 %v187
  %v252 = vunpack.c.l.b16 %v188
  %v253 = vunpack.c.l.b16 %v189
  %v254 = vunpack.c.l.b16 %v190
  %v255 = vpack.c.b16 %v248, %v247
  %v256 = vpack.c.b16 %v250, %v249
  %v257 = vpack.c.b16 %v252, %v251
  %v258 = vpack.c.b16 %v254, %v253
  %vm259 = vcmask 261120
  %v261 = vsel %vm259, %v255, 0
  %v264 = vsel %vm259, %v256, 0
  %v267 = vsel %vm259, %v257, 0
  %v270 = vsel %vm259, %v258, 0
  %272 = vmatprep.subr.bf16.mxu0 0
  %273 = vmatpush1.bf16.msra.mxu0 %v181
  %274 = vmatprep.subr.bf16.mxu0 0
  %275 = vmatpush1.bf16.msra.mxu0 %v182
  %276 = vmatprep.subr.bf16.mxu0 0
  %277 = vmatpush1.bf16.msra.mxu0 0
  %278 = vmatprep.subr.bf16.mxu0 0
  %279 = vmatpush1.bf16.msra.mxu0 0
  %280 = vmatprep.subr.bf16.mxu0 0
  %281 = vmatpush1.bf16.msra.mxu0 0
  %282 = vmatprep.subr.bf16.mxu0 0
  %283 = vmatpush1.bf16.msra.mxu0 0
  %284 = vmatprep.subr.bf16.mxu0 0
  %285 = vmatpush1.bf16.msra.mxu0 0
  %286 = vmatprep.subr.bf16.mxu0 0
  %287 = vmatpush1.bf16.msra.mxu0 0
  %288 = vmatprep.subr.bf16.mxu0 0
  %289 = vmatpush1.bf16.msra.mxu0 0
  %290 = vmatprep.subr.bf16.mxu0 0
  %291 = vmatpush1.bf16.msra.mxu0 0
  %292 = vmatprep.subr.bf16.mxu0 0
  %293 = vmatpush1.bf16.msra.mxu0 0
  %294 = vmatprep.subr.bf16.mxu0 0
  %295 = vmatpush1.bf16.msra.mxu0 0
  %296 = vmatprep.subr.bf16.mxu0 0
  %297 = vmatpush1.bf16.msra.mxu0 0
  %298 = vmatprep.subr.bf16.mxu0 0
  %299 = vmatpush1.bf16.msra.mxu0 0
  %300 = vmatprep.subr.bf16.mxu0 0
  %301 = vmatpush1.bf16.msra.mxu0 0
  %302 = vmatprep.subr.bf16.mxu0 0
  %303 = vmatpush1.bf16.msra.mxu0 0
  %304 = vmatprep.mubr.bf16.mxu0 0
  %305 = vmatmul.mubr.bf16.gmra.mrb[0].mxu0 %v261
  %v306 = vpop.f32.mrb[0].mxu0
  %v307 = vadd.f32 %v202, %v306
  %v308 = vpop.f32.mrb[0].mxu0
  %v309 = vpop.f32.mrb[0].mxu0
  %v310 = vadd.f32 %v207, %v309
  %v311 = vpop.f32.mrb[0].mxu0
  %312 = vmatprep.mubr.bf16.mxu0 0
  %313 = vmatmul.mubr.bf16.gmra.mrb[0].mxu0 %v264
  %v314 = vpop.f32.mrb[0].mxu0
  %v315 = vadd.f32 %v212, %v314
  %v316 = vpop.f32.mrb[0].mxu0
  %v317 = vpop.f32.mrb[0].mxu0
  %v318 = vadd.f32 %v217, %v317
  %v319 = vpop.f32.mrb[0].mxu0
  %320 = vmatprep.mubr.bf16.mxu0 0
  %321 = vmatmul.mubr.bf16.gmra.mrb[0].mxu0 %v267
  %v322 = vpop.f32.mrb[0].mxu0
  %v323 = vadd.f32 %v222, %v322
  %v324 = vpop.f32.mrb[0].mxu0
  %v325 = vpop.f32.mrb[0].mxu0
  %v326 = vadd.f32 %v227, %v325
  %v327 = vpop.f32.mrb[0].mxu0
  %328 = vmatprep.mubr.bf16.mxu0 0
  %329 = vmatmul.mubr.bf16.gmra.mrb[0].mxu0 %v270
  %v330 = vpop.f32.mrb[0].mxu0
  %v331 = vadd.f32 %v232, %v330
  %v332 = vpop.f32.mrb[0].mxu0
  %v333 = vpop.f32.mrb[0].mxu0
  %v334 = vadd.f32 %v237, %v333
  %v335 = vpop.f32.mrb[0].mxu0
  %336 = vdwg.mxu0
  %v337 = vmax.f32 %v307, 0.0
  %v338 = vmax.f32 %v310, 0.0
  %v339 = vmax.f32 %v315, 0.0
  %v340 = vmax.f32 %v318, 0.0
  %v341 = vmax.f32 %v323, 0.0
  %v342 = vmax.f32 %v326, 0.0
  %v343 = vmax.f32 %v331, 0.0
  %v344 = vmax.f32 %v334, 0.0
  %v345 = vpack.c.bf16 %v338, %v337
  %v346 = vpack.c.bf16 %v340, %v339
  %v347 = vpack.c.bf16 %v342, %v341
  %v348 = vpack.c.bf16 %v344, %v343
  %v349 = vld [vmem:[%s5] sm:$0xf]
  %v350 = vld [vmem:[%s5 + $0x4] sm:$0xf]
  %v351 = vld [vmem:[%s5 + $0x8] sm:$0xf]
  %v352 = vld [vmem:[%s5 + $0xc] sm:$0xf]
  %v353 = vld [vmem:[%s6] sm:$0xff]
  %v354 = vld [vmem:[%s6 + $0x8] sm:$0xff]
  %v355 = vld [vmem:[%s6 + $0x10] sm:$0xff]
  %v356 = vld [vmem:[%s6 + $0x18] sm:$0xff]
  %358 = vset.pattern.permute.xlu0 0
  %359 = vperm.xlu0 %358, %v353
  %v360 = vpop.permute.xlu0 %359
  %363 = vset.pattern.permute.xlu0 0
  %364 = vperm.xlu0 %363, %v354
  %v365 = vpop.permute.xlu0 %364
  %368 = vset.pattern.permute.xlu0 0
  %369 = vperm.xlu0 %368, %v355
  %v370 = vpop.permute.xlu0 %369
  %373 = vset.pattern.permute.xlu0 0
  %374 = vperm.xlu0 %373, %v356
  %v375 = vpop.permute.xlu0 %374
  %v381 = vunpack.c.l.b16 %v349
  %v382 = vunpack.c.l.b16 %v350
  %v383 = vunpack.c.l.b16 %v351
  %v384 = vunpack.c.l.b16 %v352
  %v385 = vpack.c.b16 %v382, %v381
  %v386 = vpack.c.b16 %v384, %v383
  %vm387 = vcmask 523264
  %v389 = vsel %vm387, %v385, 0
  %v392 = vsel %vm387, %v386, 0
  %394 = vmatprep.subr.bf16.mxu0 0
  %395 = vmatpush1.bf16.msra.mxu0 %v345
  %396 = vmatprep.subr.bf16.mxu0 0
  %397 = vmatpush1.bf16.msra.mxu0 %v346
  %398 = vmatprep.subr.bf16.mxu0 0
  %399 = vmatpush1.bf16.msra.mxu0 %v347
  %400 = vmatprep.subr.bf16.mxu0 0
  %401 = vmatpush1.bf16.msra.mxu0 %v348
  %402 = vmatprep.subr.bf16.mxu0 0
  %403 = vmatpush1.bf16.msra.mxu0 0
  %404 = vmatprep.subr.bf16.mxu0 0
  %405 = vmatpush1.bf16.msra.mxu0 0
  %406 = vmatprep.subr.bf16.mxu0 0
  %407 = vmatpush1.bf16.msra.mxu0 0
  %408 = vmatprep.subr.bf16.mxu0 0
  %409 = vmatpush1.bf16.msra.mxu0 0
  %410 = vmatprep.subr.bf16.mxu0 0
  %411 = vmatpush1.bf16.msra.mxu0 0
  %412 = vmatprep.subr.bf16.mxu0 0
  %413 = vmatpush1.bf16.msra.mxu0 0
  %414 = vmatprep.subr.bf16.mxu0 0
  %415 = vmatpush1.bf16.msra.mxu0 0
  %416 = vmatprep.subr.bf16.mxu0 0
  %417 = vmatpush1.bf16.msra.mxu0 0
  %418 = vmatprep.subr.bf16.mxu0 0
  %419 = vmatpush1.bf16.msra.mxu0 0
  %420 = vmatprep.subr.bf16.mxu0 0
  %421 = vmatpush1.bf16.msra.mxu0 0
  %422 = vmatprep.subr.bf16.mxu0 0
  %423 = vmatpush1.bf16.msra.mxu0 0
  %424 = vmatprep.subr.bf16.mxu0 0
  %425 = vmatpush1.bf16.msra.mxu0 0
  %426 = vmatprep.mubr.bf16.mxu0 0
  %427 = vmatmul.mubr.bf16.gmra.mrb[0].mxu0 %v389
  %v428 = vpop.f32.mrb[0].mxu0
  %v429 = vadd.f32 %v360, %v428
  %v430 = vpop.f32.mrb[0].mxu0
  %v431 = vpop.f32.mrb[0].mxu0
  %v432 = vadd.f32 %v365, %v431
  %v433 = vpop.f32.mrb[0].mxu0
  %434 = vmatprep.mubr.bf16.mxu0 0
  %435 = vmatmul.mubr.bf16.gmra.mrb[0].mxu0 %v392
  %v436 = vpop.f32.mrb[0].mxu0
  %v437 = vadd.f32 %v370, %v436
  %v438 = vpop.f32.mrb[0].mxu0
  %v439 = vpop.f32.mrb[0].mxu0
  %v440 = vadd.f32 %v375, %v439
  %v441 = vpop.f32.mrb[0].mxu0
  %442 = vdwg.mxu0
  %v443 = vmax.f32 %v429, 0.0
  %v444 = vmax.f32 %v432, 0.0
  %v445 = vmax.f32 %v437, 0.0
  %v446 = vmax.f32 %v440, 0.0
  %v447 = vld [vmem:[%s7] sm:$0xff]
  %v448 = vld [vmem:[%s7 + $0x8] sm:$0xff]
  %v449 = vld [vmem:[%s7 + $0x10] sm:$0xff]
  %v450 = vld [vmem:[%s7 + $0x18] sm:$0xff]
  %452 = vset.pattern.permute.xlu0 0
  %453 = vperm.xlu0 %452, %v447
  %v454 = vpop.permute.xlu0 %453
  %457 = vset.pattern.permute.xlu0 0
  %458 = vperm.xlu0 %457, %v448
  %v459 = vpop.permute.xlu0 %458
  %462 = vset.pattern.permute.xlu0 0
  %463 = vperm.xlu0 %462, %v449
  %v464 = vpop.permute.xlu0 %463
  %467 = vset.pattern.permute.xlu0 0
  %468 = vperm.xlu0 %467, %v450
  %v469 = vpop.permute.xlu0 %468
  %v471 = vmul.f32 %v443, %v454
  %v472 = vmul.f32 %v444, %v459
  %v473 = vmul.f32 %v445, %v464
  %v474 = vmul.f32 %v446, %v469
  %v475 = vadd.f32 %v471, %v472
  %v476 = vadd.f32 %v475, %v473
  %v477 = vadd.f32 %v476, %v474
  %v478 = vrot.slane %v477, 4
  %v479 = vadd.f32 %v477, %v478
  %v480 = vrot.slane %v479, 2
  %v481 = vadd.f32 %v479, %v480
  %v482 = vrot.slane %v481, 1
  %v483 = vadd.f32 %v481, %v482
  %v484 = vld [vmem:[#allocation2] sm:$0x1]
  %486 = vset.pattern.permute.xlu0 0
  %487 = vperm.xlu0 %486, %v484
  %v488 = vpop.permute.xlu0 %487
  %v490 = vlaneseq
  %v491 = vshrl.u32 %v490, 7
  %v492 = vsub.s32 0, %v491
  %v493 = vrot.slane %v488, %v492
  %v494 = vadd.f32 %v483, %v493
  %495 = vst [vmem:[%s9] sm:$0x1] %v494
  // Predicated region
  $region38: #{my_model_forward.1} parent=0 // pred_check
    _
  $region39: #{my_model_forward.1} parent=0 // pred_check_branch
    %497 = sbr.rel (0) target = $region41
  $region40: #{my_model_forward.1} parent=0 // pred_region
    _
  $region41: #{my_model_forward.1} parent=0 // pred_fallthru
    _
  // Predicated region
  $region42: #{my_model_forward.1} parent=0 // pred_check
    _
  $region43: #{my_model_forward.1} parent=0 // pred_check_branch
    %499 = sbr.rel (0) target = $region45
  $region44: #{my_model_forward.1} parent=0 // pred_region
    _
  $region45: #{my_model_forward.1} parent=0 // pred_fallthru
    _

</llo_original>
